<compile_context>
chip_gen: v6e
topology: v6e:2x2x1
jax: 0.10.0
libtpu: 0.0.40
codegen_flags: <defaults>
</compile_context>

<pallas_src>
import math

import jax
import jax.numpy as jnp
import numpy as np
from jax.experimental import pallas as pl
from jax.experimental.pallas import tpu as pltpu


def _make_loss_kernel(alpha, B, D, k, R):
    """Kernel body factory.

    B, D are the *original* batch / per-sample feature counts, k is the number
    of sublane rows each sample was folded into, R = B * k (rows per block).
    """
    alpha = float(alpha)
    inv_D = 1.0 / float(D)
    eps = 1e-8

    def kernel(p_ref, t_ref, out_ref, acc_p, acc_t, acc_pt, acc_pp, acc_tt):
        d = pl.program_id(0)

        # ---- init accumulators on the first feature tile ----
        @pl.when(d == 0)
        def _init():
            for a in (acc_p, acc_t, acc_pt, acc_pp, acc_tt):
                a[...] = jnp.zeros_like(a)

        # ---- streaming raw-moment update (pure VPU, no big temporaries) ----
        p = p_ref[...].astype(jnp.float32)
        t = t_ref[...].astype(jnp.float32)
        acc_p[...] += p
        acc_t[...] += t
        acc_pt[...] += p * t
        acc_pp[...] += p * p
        acc_tt[...] += t * t

        # ---- finalize on the last feature tile ----
        @pl.when(d == pl.num_programs(0) - 1)
        def _finalize():
            if k == 1:
                # Rows are already one-per-sample: single deferred lane reduce.
                Sp = jnp.sum(acc_p[...], axis=1, keepdims=True)
                St = jnp.sum(acc_t[...], axis=1, keepdims=True)
                Spt = jnp.sum(acc_pt[...], axis=1, keepdims=True)
                Spp = jnp.sum(acc_pp[...], axis=1, keepdims=True)
                Stt = jnp.sum(acc_tt[...], axis=1, keepdims=True)
            else:
                # Fold the k sublane rows of each sample back together with a
                # tiny constant 0/1 matrix (raw moments are linear), then do
                # the single deferred cross-lane reduction.
                r_idx = jax.lax.broadcasted_iota(jnp.int32, (B, R), 1)
                b_idx = jax.lax.broadcasted_iota(jnp.int32, (B, R), 0)
                lo = b_idx * k
                fold = ((r_idx >= lo) & (r_idx < lo + k)).astype(jnp.float32)

                def _sample_sum(acc):
                    per_sample = jnp.dot(fold, acc[...],
                                         preferred_element_type=jnp.float32)
                    return jnp.sum(per_sample, axis=1, keepdims=True)  # (B, 1)

                Sp = _sample_sum(acc_p)
                St = _sample_sum(acc_t)
                Spt = _sample_sum(acc_pt)
                Spp = _sample_sum(acc_pp)
                Stt = _sample_sum(acc_tt)

            # Per-sample Pearson correlation from raw moments.
            num = Spt - Sp * St * inv_D
            var_p = Spp - Sp * Sp * inv_D
            var_t = Stt - St * St * inv_D
            corr = num * jax.lax.rsqrt(var_p * var_t + eps)
            corr_loss = 1.0 - jnp.sum(corr) / B

            # Global MSE from the same moments: sum (p - t)^2 = Spp + Stt - 2 Spt.
            mse = jnp.sum(Spp + Stt - 2.0 * Spt) / (B * D)

            out_ref[0, 0] = (mse + alpha * corr_loss).astype(jnp.float32)

    return kernel


def mse_correlation_loss(y_pred, y_true, alpha=0.5):
    """Pallas implementation of MSECorrelationLoss.forward.

    y_pred, y_true: (B, ...) arrays (e.g. NCHW), any float dtype.
    Returns a scalar float32 loss.
    """
    assert y_pred.shape == y_true.shape
    assert y_pred.dtype == y_true.dtype
    B = y_pred.shape[0]
    D = int(np.prod(y_pred.shape[1:]))
    itemsize = y_pred.dtype.itemsize

    # --- sublane folding: view each sample as k rows so R = lcm(B, sub) ---
    sub = max(8, 32 // itemsize)          # 8 (f32), 16 (bf16), 32 (int8/fp8)
    k = sub // math.gcd(B, sub)           # always a power of two
    R = B * k                             # rows per block, multiple of `sub`

    # --- lane tiling along the folded feature axis ---
    c_raw = -(-D // k)                    # ceil(D / k)
    C = -(-c_raw // 128) * 128            # round up to a lane multiple
    TILE_C = 128
    for cand in (2048, 1024, 512, 256):
        if C % cand == 0:
            TILE_C = cand
            break
    # Keep 2 inputs x 2 pipeline buffers + 5 f32 accumulators well under the
    # scoped VMEM limit on every generation (v5e 16 MiB default, v7x 64 MiB).
    while TILE_C > 128 and (4 * R * TILE_C * itemsize + 5 * R * TILE_C * 4) > (8 << 20):
        TILE_C //= 2
    num_tiles = C // TILE_C

    # --- reshape (B, D) -> (R, C); zero-pad the feature tail (zeros add
    #     nothing to any raw moment, so the result is exact) ---
    p = y_pred.reshape(B, D)
    t = y_true.reshape(B, D)
    pad = k * C - D
    if pad:
        p = jnp.pad(p, ((0, 0), (0, pad)))
        t = jnp.pad(t, ((0, 0), (0, pad)))
    p = p.reshape(R, C)
    t = t.reshape(R, C)

    kernel = _make_loss_kernel(alpha, B, D, k, R)

    out = pl.pallas_call(
        kernel,
        out_shape=jax.ShapeDtypeStruct((1, 1), jnp.float32),
        grid_spec=pltpu.PrefetchScalarGridSpec(
            num_scalar_prefetch=0,
            grid=(num_tiles,),
            in_specs=[
                pl.BlockSpec((R, TILE_C), lambda d: (0, d)),
                pl.BlockSpec((R, TILE_C), lambda d: (0, d)),
            ],
            out_specs=pl.BlockSpec(memory_space=pltpu.MemorySpace.SMEM),
            scratch_shapes=[pltpu.VMEM((R, TILE_C), jnp.float32)] * 5,
        ),
        compiler_params=pltpu.CompilerParams(
            dimension_semantics=("arbitrary",)),
        cost_estimate=pl.CostEstimate(
            flops=8 * R * C,
            transcendentals=B,
            bytes_accessed=2 * R * C * itemsize + 4),
    )(p, t)
    return out[0, 0]


def _reference_loss(y_pred, y_true, alpha=0.5):
    # Pure-JAX reference mirroring the PyTorch module.
    B = y_pred.shape[0]
    mse = jnp.mean((y_pred - y_true) ** 2)
    p = y_pred.reshape(B, -1)
    t = y_true.reshape(B, -1)
    pc = p - jnp.mean(p, axis=1, keepdims=True)
    tc = t - jnp.mean(t, axis=1, keepdims=True)
    num = jnp.sum(pc * tc, axis=1)
    den = jnp.sqrt(jnp.sum(pc ** 2, axis=1) * jnp.sum(tc ** 2, axis=1) + 1e-8)
    corr = num / den
    return mse + alpha * (1.0 - jnp.mean(corr))


if __name__ == "__main__":
    key = jax.random.PRNGKey(0)

    cases = [
        ((2, 4, 16, 16), jnp.float32),   # primary small NCHW case
        ((4, 8, 32, 32), jnp.float32),   # multi-tile streaming + sublane fold
        ((8, 4, 16, 16), jnp.float32),   # batch already a sublane multiple (k=1)
        ((2, 3, 5, 7), jnp.float32),     # ragged D -> zero-padding path
        ((2, 4, 16, 16), jnp.bfloat16),  # native bf16 DMA, f32 accumulation
    ]

    for shape, dtype in cases:
        key, k1, k2 = jax.random.split(key, 3)
        y_pred = jax.random.normal(k1, shape, dtype=jnp.float32).astype(dtype)
        y_true = jax.random.normal(k2, shape, dtype=jnp.float32).astype(dtype)

        loss = jax.block_until_ready(
            mse_correlation_loss(y_pred, y_true, alpha=0.5))
        ref = jax.block_until_ready(
            _reference_loss(y_pred.astype(jnp.float32),
                            y_true.astype(jnp.float32), alpha=0.5))
        np.testing.assert_allclose(np.asarray(loss), np.asarray(ref),
                                   rtol=1e-5, atol=1e-5)

    print("KERNEL_OK")
</pallas_src>

<mosaic_0001>
module attributes {stable_mosaic.version = 11 : i64} {
  func.func @kernel(%arg0: i32, %arg1: memref<8x256xf32, #tpu.memory_space<vmem>>, %arg2: memref<8x256xf32, #tpu.memory_space<vmem>>, %arg3: memref<1x1xf32, #tpu.memory_space<smem>>, %arg4: memref<8x256xf32, #tpu.memory_space<vmem>>, %arg5: memref<8x256xf32, #tpu.memory_space<vmem>>, %arg6: memref<8x256xf32, #tpu.memory_space<vmem>>, %arg7: memref<8x256xf32, #tpu.memory_space<vmem>>, %arg8: memref<8x256xf32, #tpu.memory_space<vmem>>) attributes {dimension_semantics = [#tpu.dimension_semantics<arbitrary>], iteration_bounds = array<i64: 1>, scalar_prefetch = 0 : i64, scratch_operands = 5 : i64, tpu.core_type = #tpu.core_type<tc>, window_params = [{transform_indices = @transform_0, window_bounds = array<i64: 8, 256>}, {transform_indices = @transform_1, window_bounds = array<i64: 8, 256>}, {transform_indices = @transform_2, window_bounds = array<i64: 1, 1>}]} {
    %c0_i32 = arith.constant 0 : i32
    %0 = arith.cmpi eq, %arg0, %c0_i32 : i32
    %1 = arith.extui %0 : i1 to i32
    %c0_i32_0 = arith.constant 0 : i32
    %2 = arith.cmpi ne, %1, %c0_i32_0 : i32
    scf.if %2 {
      %cst = arith.constant 0.000000e+00 : f32
      %26 = vector.broadcast %cst : f32 to vector<8x256xf32>
      %c0_26 = arith.constant 0 : index
      %c0_27 = arith.constant 0 : index
      %27 = vector.load %arg4[%c0_26, %c0_27] : memref<8x256xf32, #tpu.memory_space<vmem>>, vector<8x256xf32>
      tpu.vector_store %arg4[%c0_26, %c0_27], %26 {strides = array<i32>} : memref<8x256xf32, #tpu.memory_space<vmem>>, vector<8x256xf32>,
      %cst_28 = arith.constant 0.000000e+00 : f32
      %28 = vector.broadcast %cst_28 : f32 to vector<8x256xf32>
      %c0_29 = arith.constant 0 : index
      %c0_30 = arith.constant 0 : index
      %29 = vector.load %arg5[%c0_29, %c0_30] : memref<8x256xf32, #tpu.memory_space<vmem>>, vector<8x256xf32>
      tpu.vector_store %arg5[%c0_29, %c0_30], %28 {strides = array<i32>} : memref<8x256xf32, #tpu.memory_space<vmem>>, vector<8x256xf32>,
      %cst_31 = arith.constant 0.000000e+00 : f32
      %30 = vector.broadcast %cst_31 : f32 to vector<8x256xf32>
      %c0_32 = arith.constant 0 : index
      %c0_33 = arith.constant 0 : index
      %31 = vector.load %arg6[%c0_32, %c0_33] : memref<8x256xf32, #tpu.memory_space<vmem>>, vector<8x256xf32>
      tpu.vector_store %arg6[%c0_32, %c0_33], %30 {strides = array<i32>} : memref<8x256xf32, #tpu.memory_space<vmem>>, vector<8x256xf32>,
      %cst_34 = arith.constant 0.000000e+00 : f32
      %32 = vector.broadcast %cst_34 : f32 to vector<8x256xf32>
      %c0_35 = arith.constant 0 : index
      %c0_36 = arith.constant 0 : index
      %33 = vector.load %arg7[%c0_35, %c0_36] : memref<8x256xf32, #tpu.memory_space<vmem>>, vector<8x256xf32>
      tpu.vector_store %arg7[%c0_35, %c0_36], %32 {strides = array<i32>} : memref<8x256xf32, #tpu.memory_space<vmem>>, vector<8x256xf32>,
      %cst_37 = arith.constant 0.000000e+00 : f32
      %34 = vector.broadcast %cst_37 : f32 to vector<8x256xf32>
      %c0_38 = arith.constant 0 : index
      %c0_39 = arith.constant 0 : index
      %35 = vector.load %arg8[%c0_38, %c0_39] : memref<8x256xf32, #tpu.memory_space<vmem>>, vector<8x256xf32>
      tpu.vector_store %arg8[%c0_38, %c0_39], %34 {strides = array<i32>} : memref<8x256xf32, #tpu.memory_space<vmem>>, vector<8x256xf32>,
    } else {
    }
    %c0 = arith.constant 0 : index
    %c0_1 = arith.constant 0 : index
    %3 = vector.load %arg1[%c0, %c0_1] : memref<8x256xf32, #tpu.memory_space<vmem>>, vector<8x256xf32>
    %c0_2 = arith.constant 0 : index
    %c0_3 = arith.constant 0 : index
    %4 = vector.load %arg2[%c0_2, %c0_3] : memref<8x256xf32, #tpu.memory_space<vmem>>, vector<8x256xf32>
    %c0_4 = arith.constant 0 : index
    %c0_5 = arith.constant 0 : index
    %5 = vector.load %arg4[%c0_4, %c0_5] : memref<8x256xf32, #tpu.memory_space<vmem>>, vector<8x256xf32>
    %6 = arith.addf %5, %3 : vector<8x256xf32>
    %c0_6 = arith.constant 0 : index
    %c0_7 = arith.constant 0 : index
    %7 = vector.load %arg4[%c0_6, %c0_7] : memref<8x256xf32, #tpu.memory_space<vmem>>, vector<8x256xf32>
    tpu.vector_store %arg4[%c0_6, %c0_7], %6 {strides = array<i32>} : memref<8x256xf32, #tpu.memory_space<vmem>>, vector<8x256xf32>,
    %c0_8 = arith.constant 0 : index
    %c0_9 = arith.constant 0 : index
    %8 = vector.load %arg5[%c0_8, %c0_9] : memref<8x256xf32, #tpu.memory_space<vmem>>, vector<8x256xf32>
    %9 = arith.addf %8, %4 : vector<8x256xf32>
    %c0_10 = arith.constant 0 : index
    %c0_11 = arith.constant 0 : index
    %10 = vector.load %arg5[%c0_10, %c0_11] : memref<8x256xf32, #tpu.memory_space<vmem>>, vector<8x256xf32>
    tpu.vector_store %arg5[%c0_10, %c0_11], %9 {strides = array<i32>} : memref<8x256xf32, #tpu.memory_space<vmem>>, vector<8x256xf32>,
    %c0_12 = arith.constant 0 : index
    %c0_13 = arith.constant 0 : index
    %11 = vector.load %arg6[%c0_12, %c0_13] : memref<8x256xf32, #tpu.memory_space<vmem>>, vector<8x256xf32>
    %12 = arith.mulf %3, %4 : vector<8x256xf32>
    %13 = arith.addf %11, %12 : vector<8x256xf32>
    %c0_14 = arith.constant 0 : index
    %c0_15 = arith.constant 0 : index
    %14 = vector.load %arg6[%c0_14, %c0_15] : memref<8x256xf32, #tpu.memory_space<vmem>>, vector<8x256xf32>
    tpu.vector_store %arg6[%c0_14, %c0_15], %13 {strides = array<i32>} : memref<8x256xf32, #tpu.memory_space<vmem>>, vector<8x256xf32>,
    %c0_16 = arith.constant 0 : index
    %c0_17 = arith.constant 0 : index
    %15 = vector.load %arg7[%c0_16, %c0_17] : memref<8x256xf32, #tpu.memory_space<vmem>>, vector<8x256xf32>
    %16 = arith.mulf %3, %3 : vector<8x256xf32>
    %17 = arith.addf %15, %16 : vector<8x256xf32>
    %c0_18 = arith.constant 0 : index
    %c0_19 = arith.constant 0 : index
    %18 = vector.load %arg7[%c0_18, %c0_19] : memref<8x256xf32, #tpu.memory_space<vmem>>, vector<8x256xf32>
    tpu.vector_store %arg7[%c0_18, %c0_19], %17 {strides = array<i32>} : memref<8x256xf32, #tpu.memory_space<vmem>>, vector<8x256xf32>,
    %c0_20 = arith.constant 0 : index
    %c0_21 = arith.constant 0 : index
    %19 = vector.load %arg8[%c0_20, %c0_21] : memref<8x256xf32, #tpu.memory_space<vmem>>, vector<8x256xf32>
    %20 = arith.mulf %4, %4 : vector<8x256xf32>
    %21 = arith.addf %19, %20 : vector<8x256xf32>
    %c0_22 = arith.constant 0 : index
    %c0_23 = arith.constant 0 : index
    %22 = vector.load %arg8[%c0_22, %c0_23] : memref<8x256xf32, #tpu.memory_space<vmem>>, vector<8x256xf32>
    tpu.vector_store %arg8[%c0_22, %c0_23], %21 {strides = array<i32>} : memref<8x256xf32, #tpu.memory_space<vmem>>, vector<8x256xf32>,
    %c0_i32_24 = arith.constant 0 : i32
    %23 = arith.cmpi eq, %arg0, %c0_i32_24 : i32
    %24 = arith.extui %23 : i1 to i32
    %c0_i32_25 = arith.constant 0 : i32
    %25 = arith.cmpi ne, %24, %c0_i32_25 : i32
    scf.if %25 {
      %26 = tpu.iota {dimensions = array<i32: 1>} : vector<2x8xi32>
      %27 = tpu.iota {dimensions = array<i32: 0>} : vector<2x8xi32>
      %c4_i32 = arith.constant 4 : i32
      %28 = vector.broadcast %c4_i32 : i32 to vector<2x8xi32>
      %29 = arith.muli %27, %28 : vector<2x8xi32>
      %30 = arith.cmpi sge, %26, %29 : vector<2x8xi32>
      %c4_i32_26 = arith.constant 4 : i32
      %31 = vector.broadcast %c4_i32_26 : i32 to vector<2x8xi32>
      %32 = arith.addi %29, %31 : vector<2x8xi32>
      %33 = arith.cmpi slt, %26, %32 : vector<2x8xi32>
      %34 = arith.andi %30, %33 : vector<2x8xi1>
      %35 = arith.extui %34 : vector<2x8xi1> to vector<2x8xi32>
      %36 = arith.sitofp %35 : vector<2x8xi32> to vector<2x8xf32>
      %c0_27 = arith.constant 0 : index
      %c0_28 = arith.constant 0 : index
      %37 = vector.load %arg4[%c0_27, %c0_28] : memref<8x256xf32, #tpu.memory_space<vmem>>, vector<8x256xf32>
      %cst = arith.constant dense<0.000000e+00> : vector<2x256xf32>
      %38 = tpu.matmul %36, %37, %cst {dimension_numbers = #tpu.dot_dimension_numbers<[1], [0], [0], [1], [0, 0, 1, 1], [], []>} : vector<2x8xf32>, vector<8x256xf32>, vector<2x256xf32> -> vector<2x256xf32>
      %cst_29 = arith.constant dense<0.000000e+00> : vector<2xf32>
      %39 = vector.multi_reduction <add>, %38, %cst_29 [1] : vector<2x256xf32> to vector<2xf32>
      %40 = vector.shape_cast %39 : vector<2xf32> to vector<2x1xf32>
      %c0_30 = arith.constant 0 : index
      %c0_31 = arith.constant 0 : index
      %41 = vector.load %arg5[%c0_30, %c0_31] : memref<8x256xf32, #tpu.memory_space<vmem>>, vector<8x256xf32>
      %cst_32 = arith.constant dense<0.000000e+00> : vector<2x256xf32>
      %42 = tpu.matmul %36, %41, %cst_32 {dimension_numbers = #tpu.dot_dimension_numbers<[1], [0], [0], [1], [0, 0, 1, 1], [], []>} : vector<2x8xf32>, vector<8x256xf32>, vector<2x256xf32> -> vector<2x256xf32>
      %cst_33 = arith.constant dense<0.000000e+00> : vector<2xf32>
      %43 = vector.multi_reduction <add>, %42, %cst_33 [1] : vector<2x256xf32> to vector<2xf32>
      %44 = vector.shape_cast %43 : vector<2xf32> to vector<2x1xf32>
      %c0_34 = arith.constant 0 : index
      %c0_35 = arith.constant 0 : index
      %45 = vector.load %arg6[%c0_34, %c0_35] : memref<8x256xf32, #tpu.memory_space<vmem>>, vector<8x256xf32>
      %cst_36 = arith.constant dense<0.000000e+00> : vector<2x256xf32>
      %46 = tpu.matmul %36, %45, %cst_36 {dimension_numbers = #tpu.dot_dimension_numbers<[1], [0], [0], [1], [0, 0, 1, 1], [], []>} : vector<2x8xf32>, vector<8x256xf32>, vector<2x256xf32> -> vector<2x256xf32>
      %cst_37 = arith.constant dense<0.000000e+00> : vector<2xf32>
      %47 = vector.multi_reduction <add>, %46, %cst_37 [1] : vector<2x256xf32> to vector<2xf32>
      %48 = vector.shape_cast %47 : vector<2xf32> to vector<2x1xf32>
      %c0_38 = arith.constant 0 : index
      %c0_39 = arith.constant 0 : index
      %49 = vector.load %arg7[%c0_38, %c0_39] : memref<8x256xf32, #tpu.memory_space<vmem>>, vector<8x256xf32>
      %cst_40 = arith.constant dense<0.000000e+00> : vector<2x256xf32>
      %50 = tpu.matmul %36, %49, %cst_40 {dimension_numbers = #tpu.dot_dimension_numbers<[1], [0], [0], [1], [0, 0, 1, 1], [], []>} : vector<2x8xf32>, vector<8x256xf32>, vector<2x256xf32> -> vector<2x256xf32>
      %cst_41 = arith.constant dense<0.000000e+00> : vector<2xf32>
      %51 = vector.multi_reduction <add>, %50, %cst_41 [1] : vector<2x256xf32> to vector<2xf32>
      %52 = vector.shape_cast %51 : vector<2xf32> to vector<2x1xf32>
      %c0_42 = arith.constant 0 : index
      %c0_43 = arith.constant 0 : index
      %53 = vector.load %arg8[%c0_42, %c0_43] : memref<8x256xf32, #tpu.memory_space<vmem>>, vector<8x256xf32>
      %cst_44 = arith.constant dense<0.000000e+00> : vector<2x256xf32>
      %54 = tpu.matmul %36, %53, %cst_44 {dimension_numbers = #tpu.dot_dimension_numbers<[1], [0], [0], [1], [0, 0, 1, 1], [], []>} : vector<2x8xf32>, vector<8x256xf32>, vector<2x256xf32> -> vector<2x256xf32>
      %cst_45 = arith.constant dense<0.000000e+00> : vector<2xf32>
      %55 = vector.multi_reduction <add>, %54, %cst_45 [1] : vector<2x256xf32> to vector<2xf32>
      %56 = vector.shape_cast %55 : vector<2xf32> to vector<2x1xf32>
      %57 = arith.mulf %40, %44 : vector<2x1xf32>
      %cst_46 = arith.constant 9.765625E-4 : f32
      %58 = vector.broadcast %cst_46 : f32 to vector<2x1xf32>
      %59 = arith.mulf %57, %58 : vector<2x1xf32>
      %60 = arith.subf %48, %59 : vector<2x1xf32>
      %61 = arith.mulf %40, %40 : vector<2x1xf32>
      %cst_47 = arith.constant 9.765625E-4 : f32
      %62 = vector.broadcast %cst_47 : f32 to vector<2x1xf32>
      %63 = arith.mulf %61, %62 : vector<2x1xf32>
      %64 = arith.subf %52, %63 : vector<2x1xf32>
      %65 = arith.mulf %44, %44 : vector<2x1xf32>
      %cst_48 = arith.constant 9.765625E-4 : f32
      %66 = vector.broadcast %cst_48 : f32 to vector<2x1xf32>
      %67 = arith.mulf %65, %66 : vector<2x1xf32>
      %68 = arith.subf %56, %67 : vector<2x1xf32>
      %69 = arith.mulf %64, %68 : vector<2x1xf32>
      %cst_49 = arith.constant 9.99999993E-9 : f32
      %70 = vector.broadcast %cst_49 : f32 to vector<2x1xf32>
      %71 = arith.addf %69, %70 : vector<2x1xf32>
      %72 = math.rsqrt %71 : vector<2x1xf32>
      %73 = arith.mulf %60, %72 : vector<2x1xf32>
      %74 = vector.shape_cast %73 : vector<2x1xf32> to vector<1x2x1xf32>
      %cst_50 = arith.constant dense<0.000000e+00> : vector<1xf32>
      %75 = vector.multi_reduction <add>, %74, %cst_50 [1, 2] : vector<1x2x1xf32> to vector<1xf32>
      %76 = vector.shape_cast %75 : vector<1xf32> to vector<1x1x1xf32>
      %77 = vector.extract %76[0, 0, 0] : f32 from vector<1x1x1xf32>
      %cst_51 = arith.constant 2.000000e+00 : f32
      %78 = arith.divf %77, %cst_51 : f32
      %cst_52 = arith.constant 1.000000e+00 : f32
      %79 = arith.subf %cst_52, %78 : f32
      %80 = arith.addf %52, %56 : vector<2x1xf32>
      %cst_53 = arith.constant 2.000000e+00 : f32
      %81 = vector.broadcast %cst_53 : f32 to vector<2x1xf32>
      %82 = arith.mulf %81, %48 : vector<2x1xf32>
      %83 = arith.subf %80, %82 : vector<2x1xf32>
      %84 = vector.shape_cast %83 : vector<2x1xf32> to vector<1x2x1xf32>
      %cst_54 = arith.constant dense<0.000000e+00> : vector<1xf32>
      %85 = vector.multi_reduction <add>, %84, %cst_54 [1, 2] : vector<1x2x1xf32> to vector<1xf32>
      %86 = vector.shape_cast %85 : vector<1xf32> to vector<1x1x1xf32>
      %87 = vector.extract %86[0, 0, 0] : f32 from vector<1x1x1xf32>
      %cst_55 = arith.constant 2.048000e+03 : f32
      %88 = arith.divf %87, %cst_55 : f32
      %cst_56 = arith.constant 5.000000e-01 : f32
      %89 = arith.mulf %cst_56, %79 : f32
      %90 = arith.addf %88, %89 : f32
      %c0_57 = arith.constant 0 : index
      %c0_58 = arith.constant 0 : index
      %91 = memref.load %arg3[%c0_57, %c0_58] : memref<1x1xf32, #tpu.memory_space<smem>>
      memref.store %90, %arg3[%c0_57, %c0_58] : memref<1x1xf32, #tpu.memory_space<smem>>
    } else {
    }
    return
  }
  func.func @transform_0(%arg0: i32) -> (i32, i32) {
    %c0_i32 = arith.constant 0 : i32
    %c0_i32_0 = arith.constant 0 : i32
    return %c0_i32, %arg0 : i32, i32
  }
  func.func @transform_1(%arg0: i32) -> (i32, i32) {
    %c0_i32 = arith.constant 0 : i32
    %c0_i32_0 = arith.constant 0 : i32
    return %c0_i32, %arg0 : i32, i32
  }
  func.func @transform_2(%arg0: i32) -> (i32, i32) {
    %c0_i32 = arith.constant 0 : i32
    %c0_i32_0 = arith.constant 0 : i32
    %c0_i32_1 = arith.constant 0 : i32
    return %c0_i32, %c0_i32_0 : i32, i32
  }
}

</mosaic_0001>

<llo_original>
// kernel: tpu_custom_call.1
$region0: #{tpu_custom_call.1}
  #allocation0 [shape = 'u32[]', space=smem, size = 0x4, offset = 0x4, fixed_abs, tag = 'smem constant byte address 0x4 - core index']
  #allocation1 [shape = 'u32[144,128]{1,0:T(1,128)}', space=vmem, size = 0x12000, scoped, tag = 'internal scratch']
  #allocation2 [shape = 'f32[8,256]{1,0:T(8,128)}', space=vmem, size = 0x2000, scoped, tag = 'scratch operand']
  #allocation3 [shape = 'f32[8,256]{1,0:T(8,128)}', space=vmem, size = 0x2000, scoped, tag = 'scratch operand']
  #allocation4 [shape = 'f32[8,256]{1,0:T(8,128)}', space=vmem, size = 0x2000, scoped, tag = 'scratch operand']
  #allocation5 [shape = 'f32[8,256]{1,0:T(8,128)}', space=vmem, size = 0x2000, scoped, tag = 'scratch operand']
  #allocation6 [shape = 'f32[8,256]{1,0:T(8,128)}', space=vmem, size = 0x2000, scoped, tag = 'scratch operand']
  %s0 = inlined_call_operand.hbm [shape: f32[8,256], index: 0, kind: input, shape index: {}]
  %s1 = inlined_call_operand.hbm [shape: f32[8,256], index: 1, kind: input, shape index: {}]
  %s2 = inlined_call_operand.hbm [shape: f32[1,1], index: 2, kind: output, shape index: {}]
  %s3 = sld [smem:[#allocation0]]
  $region34: #{tpu_custom_call.1} parent=0
    _
  %s5 = ssub.s32 1, %s3
  %s6 = scalar_select 0, %s5, %s3
  $region1: #{tpu_custom_call.1} parent=0
    #allocation7 [shape = 'u8[8192]{0}', space=vmem, size = 0x2000, scoped, tag = 'input window, operand 0, single buffered']
    #allocation8 [shape = 's32[1]{0}', space=sflag, size = 0x4, scoped, tag = 'scoped memory for tpu_custom_call.1']
    #allocation9 [shape = 's32[1]{0}', space=sflag, size = 0x4, scoped, tag = 'scoped memory for tpu_custom_call.1']
    #allocation10 [shape = 'u8[8192]{0}', space=vmem, size = 0x2000, scoped, tag = 'input window, operand 1, single buffered']
    #allocation11 [shape = 's32[1]{0}', space=sflag, size = 0x4, scoped, tag = 'scoped memory for tpu_custom_call.1']
    #allocation12 [shape = 'u8[512]{0}', space=smem, size = 0x200, scoped, tag = 'output window, operand 0, single buffered']
    %7 = vsyncpa [#allocation8], 0
    %8 = vsyncpa [#allocation11], 0
    %9 = vsyncpa [#allocation9], 0
    // Predicated region
    $region2: #{tpu_custom_call.1} parent=1 // pred_check
      _
    $region3: #{tpu_custom_call.1} parent=1 // pred_check_branch
      %11 = sbr.rel (0) target = $region5
    $region4: #{tpu_custom_call.1} parent=1 // pred_region
      %s13 = ssub.s32 256, 256
      %14 = vsyncadd [#allocation8], %s13
      %s16 = sshll.u32 [#allocation7], 4
      %s17 = int_to_ptr.vmem [resolvable:$true] %s16
      %19 = dma.hbm_to_vmem [thread:$0]  %s0, 256, %s17, [#allocation8]
    $region5: #{tpu_custom_call.1} parent=1 // pred_fallthru
      _
    // Predicated region
    $region6: #{tpu_custom_call.1} parent=1 // pred_check
      _
    $region7: #{tpu_custom_call.1} parent=1 // pred_check_branch
      %21 = sbr.rel (0) target = $region9
    $region8: #{tpu_custom_call.1} parent=1 // pred_region
      %s23 = ssub.s32 256, 256
      %24 = vsyncadd [#allocation11], %s23
      %s26 = sshll.u32 [#allocation10], 4
      %s27 = int_to_ptr.vmem [resolvable:$true] %s26
      %29 = dma.hbm_to_vmem [thread:$0]  %s1, 256, %s27, [#allocation11]
    $region9: #{tpu_custom_call.1} parent=1 // pred_fallthru
      _
    // Predicated region
    $region10: #{tpu_custom_call.1} parent=1 // pred_check
      _
    $region11: #{tpu_custom_call.1} parent=1 // pred_check_branch
      %31 = sbr.rel (0) target = $region13
    $region12: #{tpu_custom_call.1} parent=1 // pred_region
      %32 = dma.done [#allocation8], 256
    $region13: #{tpu_custom_call.1} parent=1 // pred_fallthru
      _
    // Predicated region
    $region14: #{tpu_custom_call.1} parent=1 // pred_check
      _
    $region15: #{tpu_custom_call.1} parent=1 // pred_check_branch
      %34 = sbr.rel (0) target = $region17
    $region16: #{tpu_custom_call.1} parent=1 // pred_region
      %35 = dma.done [#allocation11], 256
    $region17: #{tpu_custom_call.1} parent=1 // pred_fallthru
      _
    %p36 = scmp.eq.s32.totalorder 0, 0
    // Predicated region
    $region18: #{tpu_custom_call.1} parent=1 // pred_check
      %p37 = pneg %p36
    $region19: #{tpu_custom_call.1} parent=1 // pred_check_branch
      %39 = sbr.rel (%p37) target = $region21
    $region20: #{tpu_custom_call.1} parent=1 // pred_region
      %40 = vst [vmem:[#allocation2] sm:$0xff] 0.0
      %41 = vst [vmem:[#allocation2 + $0x8] sm:$0xff] 0.0
      %42 = vst [vmem:[#allocation3] sm:$0xff] 0.0
      %43 = vst [vmem:[#allocation3 + $0x8] sm:$0xff] 0.0
      %44 = vst [vmem:[#allocation4] sm:$0xff] 0.0
      %45 = vst [vmem:[#allocation4 + $0x8] sm:$0xff] 0.0
      %46 = vst [vmem:[#allocation5] sm:$0xff] 0.0
      %47 = vst [vmem:[#allocation5 + $0x8] sm:$0xff] 0.0
      %48 = vst [vmem:[#allocation6] sm:$0xff] 0.0
      %49 = vst [vmem:[#allocation6 + $0x8] sm:$0xff] 0.0
    $region21: #{tpu_custom_call.1} parent=1 // pred_fallthru
      _
    %v50 = vld [vmem:[#allocation7] sm:$0xff]
    %v51 = vld [vmem:[#allocation7 + $0x8] sm:$0xff]
    %v52 = vld [vmem:[#allocation10] sm:$0xff]
    %v53 = vld [vmem:[#allocation10 + $0x8] sm:$0xff]
    %v54 = vld [vmem:[#allocation2] sm:$0xff]
    %v55 = vld [vmem:[#allocation2 + $0x8] sm:$0xff]
    %v56 = vadd.f32 %v54, %v50
    %v57 = vadd.f32 %v55, %v51
    %58 = vst [vmem:[#allocation2] sm:$0xff] %v56
    %59 = vst [vmem:[#allocation2 + $0x8] sm:$0xff] %v57
    %v60 = vld [vmem:[#allocation3] sm:$0xff]
    %v61 = vld [vmem:[#allocation3 + $0x8] sm:$0xff]
    %v62 = vadd.f32 %v60, %v52
    %v63 = vadd.f32 %v61, %v53
    %64 = vst [vmem:[#allocation3] sm:$0xff] %v62
    %65 = vst [vmem:[#allocation3 + $0x8] sm:$0xff] %v63
    %v66 = vld [vmem:[#allocation4] sm:$0xff]
    %v67 = vld [vmem:[#allocation4 + $0x8] sm:$0xff]
    %v68 = vmul.f32 %v50, %v52
    %v69 = vmul.f32 %v51, %v53
    %v70 = vadd.f32 %v66, %v68
    %v71 = vadd.f32 %v67, %v69
    %72 = vst [vmem:[#allocation4] sm:$0xff] %v70
    %73 = vst [vmem:[#allocation4 + $0x8] sm:$0xff] %v71
    %v74 = vld [vmem:[#allocation5] sm:$0xff]
    %v75 = vld [vmem:[#allocation5 + $0x8] sm:$0xff]
    %v76 = vmul.f32 %v50, %v50
    %v77 = vmul.f32 %v51, %v51
    %v78 = vadd.f32 %v74, %v76
    %v79 = vadd.f32 %v75, %v77
    %80 = vst [vmem:[#allocation5] sm:$0xff] %v78
    %81 = vst [vmem:[#allocation5 + $0x8] sm:$0xff] %v79
    %v82 = vld [vmem:[#allocation6] sm:$0xff]
    %v83 = vld [vmem:[#allocation6 + $0x8] sm:$0xff]
    %v84 = vmul.f32 %v52, %v52
    %v85 = vmul.f32 %v53, %v53
    %v86 = vadd.f32 %v82, %v84
    %v87 = vadd.f32 %v83, %v85
    %88 = vst [vmem:[#allocation6] sm:$0xff] %v86
    %89 = vst [vmem:[#allocation6 + $0x8] sm:$0xff] %v87
    // Predicated region
    $region22: #{tpu_custom_call.1} parent=1 // pred_check
      %p90 = pneg %p36
    $region23: #{tpu_custom_call.1} parent=1 // pred_check_branch
      %92 = sbr.rel (%p90) target = $region25
    $region24: #{tpu_custom_call.1} parent=1 // pred_region
      %v93 = vlaneseq
      %v94 = vand.u32 %v93, 127
      %v95 = vlaneseq
      %v96 = vshrl.u32 %v95, 7
      %v97 = vmul.u32 %v96, 4
      %vm98 = vcmp.ge.s32.totalorder %v94, %v97
      %v99 = vadd.s32 %v97, 4
      %vm100 = vcmp.lt.s32.totalorder %v94, %v99
      %vm101 = vmand %vm98, %vm100
      %v102 = vsel %vm101, 1, 0
      %v103 = vcvt.s32.f32 %v102
      %v104 = vld [vmem:[#allocation2] sm:$0xff]
      %v105 = vld [vmem:[#allocation2 + $0x8] sm:$0xff]
      %vm106 = vcmask 64512
      %v108 = vsel %vm106, %v103, 0
      %110 = vmatprep.subr.mxu0 0.0
      %111 = vmatpush1.msra.mxu0 0.0
      %112 = vmatprep.subr.mxu0 0.0
      %113 = vmatpush1.msra.mxu0 0.0
      %114 = vmatprep.subr.mxu0 0.0
      %115 = vmatpush1.msra.mxu0 0.0
      %116 = vmatprep.subr.mxu0 0.0
      %117 = vmatpush1.msra.mxu0 0.0
      %118 = vmatprep.subr.mxu0 0.0
      %119 = vmatpush1.msra.mxu0 0.0
      %120 = vmatprep.subr.mxu0 0.0
      %121 = vmatpush1.msra.mxu0 0.0
      %122 = vmatprep.subr.mxu0 0.0
      %123 = vmatpush1.msra.mxu0 0.0
      %124 = vmatprep.subr.mxu0 0.0
      %125 = vmatpush1.msra.mxu0 0.0
      %126 = vmatprep.subr.mxu0 0.0
      %127 = vmatpush1.msra.mxu0 0.0
      %128 = vmatprep.subr.mxu0 0.0
      %129 = vmatpush1.msra.mxu0 0.0
      %130 = vmatprep.subr.mxu0 0.0
      %131 = vmatpush1.msra.mxu0 0.0
      %132 = vmatprep.subr.mxu0 0.0
      %133 = vmatpush1.msra.mxu0 0.0
      %134 = vmatprep.subr.mxu0 0.0
      %135 = vmatpush1.msra.mxu0 0.0
      %136 = vmatprep.subr.mxu0 0.0
      %137 = vmatpush1.msra.mxu0 0.0
      %138 = vmatprep.subr.mxu0 0.0
      %139 = vmatpush1.msra.mxu0 0.0
      %140 = vmatprep.subr.mxu0 %v105
      %141 = vmatpush1.msra.mxu0 %v104
      %142 = vmatprep.subr.mxu0 0.0
      %143 = vmatpush2.msra.mxu0 0.0
      %144 = vmatprep.subr.mxu0 0.0
      %145 = vmatpush2.msra.mxu0 0.0
      %146 = vmatprep.subr.mxu0 0.0
      %147 = vmatpush2.msra.mxu0 0.0
      %148 = vmatprep.subr.mxu0 0.0
      %149 = vmatpush2.msra.mxu0 0.0
      %150 = vmatprep.subr.mxu0 0.0
      %151 = vmatpush2.msra.mxu0 0.0
      %152 = vmatprep.subr.mxu0 0.0
      %153 = vmatpush2.msra.mxu0 0.0
      %154 = vmatprep.subr.mxu0 0.0
      %155 = vmatpush2.msra.mxu0 0.0
      %156 = vmatprep.subr.mxu0 0.0
      %157 = vmatpush2.msra.mxu0 0.0
      %158 = vmatprep.subr.mxu0 0.0
      %159 = vmatpush2.msra.mxu0 0.0
      %160 = vmatprep.subr.mxu0 0.0
      %161 = vmatpush2.msra.mxu0 0.0
      %162 = vmatprep.subr.mxu0 0.0
      %163 = vmatpush2.msra.mxu0 0.0
      %164 = vmatprep.subr.mxu0 0.0
      %165 = vmatpush2.msra.mxu0 0.0
      %166 = vmatprep.subr.mxu0 0.0
      %167 = vmatpush2.msra.mxu0 0.0
      %168 = vmatprep.subr.mxu0 0.0
      %169 = vmatpush2.msra.mxu0 0.0
      %170 = vmatprep.subr.mxu0 0.0
      %171 = vmatpush2.msra.mxu0 0.0
      %172 = vmatprep.subr.mxu0 0.0
      %173 = vmatpush2.msra.mxu0 0.0
      %174 = vmatprep.mubr.f32.mxu0 0.0
      %175 = vmatmul.mubr.f32.gmra.mxu0 %v108
      %v176 = vpop.f32.mrf.mxu0
      %v177 = vadd.f32 0.0, %v176
      %v178 = vpop.f32.mrf.mxu0
      %v179 = vadd.f32 0.0, %v178
      %180 = vdwg.mxu0
      %vm181 = vcmask 1041408
      %v182 = vsel %vm181, %v177, 0.0
      %v183 = vsel %vm181, %v179, 0.0
      %v184 = vadd.f32 %v182, %v183
      %185 = vadd.xlane.f32.xlu0 %v184
      %v186 = vpop.xlane.xlu0 %185
      %v187 = vld [vmem:[#allocation3] sm:$0xff]
      %v188 = vld [vmem:[#allocation3 + $0x8] sm:$0xff]
      %189 = vmatprep.subr.mxu0 0.0
      %190 = vmatpush1.msra.mxu0 0.0
      %191 = vmatprep.subr.mxu0 0.0
      %192 = vmatpush1.msra.mxu0 0.0
      %193 = vmatprep.subr.mxu0 0.0
      %194 = vmatpush1.msra.mxu0 0.0
      %195 = vmatprep.subr.mxu0 0.0
      %196 = vmatpush1.msra.mxu0 0.0
      %197 = vmatprep.subr.mxu0 0.0
      %198 = vmatpush1.msra.mxu0 0.0
      %199 = vmatprep.subr.mxu0 0.0
      %200 = vmatpush1.msra.mxu0 0.0
      %201 = vmatprep.subr.mxu0 0.0
      %202 = vmatpush1.msra.mxu0 0.0
      %203 = vmatprep.subr.mxu0 0.0
      %204 = vmatpush1.msra.mxu0 0.0
      %205 = vmatprep.subr.mxu0 0.0
      %206 = vmatpush1.msra.mxu0 0.0
      %207 = vmatprep.subr.mxu0 0.0
      %208 = vmatpush1.msra.mxu0 0.0
      %209 = vmatprep.subr.mxu0 0.0
      %210 = vmatpush1.msra.mxu0 0.0
      %211 = vmatprep.subr.mxu0 0.0
      %212 = vmatpush1.msra.mxu0 0.0
      %213 = vmatprep.subr.mxu0 0.0
      %214 = vmatpush1.msra.mxu0 0.0
      %215 = vmatprep.subr.mxu0 0.0
      %216 = vmatpush1.msra.mxu0 0.0
      %217 = vmatprep.subr.mxu0 0.0
      %218 = vmatpush1.msra.mxu0 0.0
      %219 = vmatprep.subr.mxu0 %v188
      %220 = vmatpush1.msra.mxu0 %v187
      %221 = vmatprep.subr.mxu0 0.0
      %222 = vmatpush2.msra.mxu0 0.0
      %223 = vmatprep.subr.mxu0 0.0
      %224 = vmatpush2.msra.mxu0 0.0
      %225 = vmatprep.subr.mxu0 0.0
      %226 = vmatpush2.msra.mxu0 0.0
      %227 = vmatprep.subr.mxu0 0.0
      %228 = vmatpush2.msra.mxu0 0.0
      %229 = vmatprep.subr.mxu0 0.0
      %230 = vmatpush2.msra.mxu0 0.0
      %231 = vmatprep.subr.mxu0 0.0
      %232 = vmatpush2.msra.mxu0 0.0
      %233 = vmatprep.subr.mxu0 0.0
      %234 = vmatpush2.msra.mxu0 0.0
      %235 = vmatprep.subr.mxu0 0.0
      %236 = vmatpush2.msra.mxu0 0.0
      %237 = vmatprep.subr.mxu0 0.0
      %238 = vmatpush2.msra.mxu0 0.0
      %239 = vmatprep.subr.mxu0 0.0
      %240 = vmatpush2.msra.mxu0 0.0
      %241 = vmatprep.subr.mxu0 0.0
      %242 = vmatpush2.msra.mxu0 0.0
      %243 = vmatprep.subr.mxu0 0.0
      %244 = vmatpush2.msra.mxu0 0.0
      %245 = vmatprep.subr.mxu0 0.0
      %246 = vmatpush2.msra.mxu0 0.0
      %247 = vmatprep.subr.mxu0 0.0
      %248 = vmatpush2.msra.mxu0 0.0
      %249 = vmatprep.subr.mxu0 0.0
      %250 = vmatpush2.msra.mxu0 0.0
      %251 = vmatprep.subr.mxu0 0.0
      %252 = vmatpush2.msra.mxu0 0.0
      %253 = vmatprep.mubr.f32.mxu0 0.0
      %254 = vmatmul.mubr.f32.gmra.mxu0 %v108
      %v255 = vpop.f32.mrf.mxu0
      %v256 = vadd.f32 0.0, %v255
      %v257 = vpop.f32.mrf.mxu0
      %v258 = vadd.f32 0.0, %v257
      %259 = vdwg.mxu0
      %v260 = vsel %vm181, %v256, 0.0
      %v261 = vsel %vm181, %v258, 0.0
      %v262 = vadd.f32 %v260, %v261
      %263 = vadd.xlane.f32.xlu0 %v262
      %v264 = vpop.xlane.xlu0 %263
      %v265 = vld [vmem:[#allocation4] sm:$0xff]
      %v266 = vld [vmem:[#allocation4 + $0x8] sm:$0xff]
      %267 = vmatprep.subr.mxu0 0.0
      %268 = vmatpush1.msra.mxu0 0.0
      %269 = vmatprep.subr.mxu0 0.0
      %270 = vmatpush1.msra.mxu0 0.0
      %271 = vmatprep.subr.mxu0 0.0
      %272 = vmatpush1.msra.mxu0 0.0
      %273 = vmatprep.subr.mxu0 0.0
      %274 = vmatpush1.msra.mxu0 0.0
      %275 = vmatprep.subr.mxu0 0.0
      %276 = vmatpush1.msra.mxu0 0.0
      %277 = vmatprep.subr.mxu0 0.0
      %278 = vmatpush1.msra.mxu0 0.0
      %279 = vmatprep.subr.mxu0 0.0
      %280 = vmatpush1.msra.mxu0 0.0
      %281 = vmatprep.subr.mxu0 0.0
      %282 = vmatpush1.msra.mxu0 0.0
      %283 = vmatprep.subr.mxu0 0.0
      %284 = vmatpush1.msra.mxu0 0.0
      %285 = vmatprep.subr.mxu0 0.0
      %286 = vmatpush1.msra.mxu0 0.0
      %287 = vmatprep.subr.mxu0 0.0
      %288 = vmatpush1.msra.mxu0 0.0
      %289 = vmatprep.subr.mxu0 0.0
      %290 = vmatpush1.msra.mxu0 0.0
      %291 = vmatprep.subr.mxu0 0.0
      %292 = vmatpush1.msra.mxu0 0.0
      %293 = vmatprep.subr.mxu0 0.0
      %294 = vmatpush1.msra.mxu0 0.0
      %295 = vmatprep.subr.mxu0 0.0
      %296 = vmatpush1.msra.mxu0 0.0
      %297 = vmatprep.subr.mxu0 %v266
      %298 = vmatpush1.msra.mxu0 %v265
      %299 = vmatprep.subr.mxu0 0.0
      %300 = vmatpush2.msra.mxu0 0.0
      %301 = vmatprep.subr.mxu0 0.0
      %302 = vmatpush2.msra.mxu0 0.0
      %303 = vmatprep.subr.mxu0 0.0
      %304 = vmatpush2.msra.mxu0 0.0
      %305 = vmatprep.subr.mxu0 0.0
      %306 = vmatpush2.msra.mxu0 0.0
      %307 = vmatprep.subr.mxu0 0.0
      %308 = vmatpush2.msra.mxu0 0.0
      %309 = vmatprep.subr.mxu0 0.0
      %310 = vmatpush2.msra.mxu0 0.0
      %311 = vmatprep.subr.mxu0 0.0
      %312 = vmatpush2.msra.mxu0 0.0
      %313 = vmatprep.subr.mxu0 0.0
      %314 = vmatpush2.msra.mxu0 0.0
      %315 = vmatprep.subr.mxu0 0.0
      %316 = vmatpush2.msra.mxu0 0.0
      %317 = vmatprep.subr.mxu0 0.0
      %318 = vmatpush2.msra.mxu0 0.0
      %319 = vmatprep.subr.mxu0 0.0
      %320 = vmatpush2.msra.mxu0 0.0
      %321 = vmatprep.subr.mxu0 0.0
      %322 = vmatpush2.msra.mxu0 0.0
      %323 = vmatprep.subr.mxu0 0.0
      %324 = vmatpush2.msra.mxu0 0.0
      %325 = vmatprep.subr.mxu0 0.0
      %326 = vmatpush2.msra.mxu0 0.0
      %327 = vmatprep.subr.mxu0 0.0
      %328 = vmatpush2.msra.mxu0 0.0
      %329 = vmatprep.subr.mxu0 0.0
      %330 = vmatpush2.msra.mxu0 0.0
      %331 = vmatprep.mubr.f32.mxu0 0.0
      %332 = vmatmul.mubr.f32.gmra.mxu0 %v108
      %v333 = vpop.f32.mrf.mxu0
      %v334 = vadd.f32 0.0, %v333
      %v335 = vpop.f32.mrf.mxu0
      %v336 = vadd.f32 0.0, %v335
      %337 = vdwg.mxu0
      %v338 = vsel %vm181, %v334, 0.0
      %v339 = vsel %vm181, %v336, 0.0
      %v340 = vadd.f32 %v338, %v339
      %341 = vadd.xlane.f32.xlu0 %v340
      %v342 = vpop.xlane.xlu0 %341
      %v343 = vld [vmem:[#allocation5] sm:$0xff]
      %v344 = vld [vmem:[#allocation5 + $0x8] sm:$0xff]
      %345 = vmatprep.subr.mxu0 0.0
      %346 = vmatpush1.msra.mxu0 0.0
      %347 = vmatprep.subr.mxu0 0.0
      %348 = vmatpush1.msra.mxu0 0.0
      %349 = vmatprep.subr.mxu0 0.0
      %350 = vmatpush1.msra.mxu0 0.0
      %351 = vmatprep.subr.mxu0 0.0
      %352 = vmatpush1.msra.mxu0 0.0
      %353 = vmatprep.subr.mxu0 0.0
      %354 = vmatpush1.msra.mxu0 0.0
      %355 = vmatprep.subr.mxu0 0.0
      %356 = vmatpush1.msra.mxu0 0.0
      %357 = vmatprep.subr.mxu0 0.0
      %358 = vmatpush1.msra.mxu0 0.0
      %359 = vmatprep.subr.mxu0 0.0
      %360 = vmatpush1.msra.mxu0 0.0
      %361 = vmatprep.subr.mxu0 0.0
      %362 = vmatpush1.msra.mxu0 0.0
      %363 = vmatprep.subr.mxu0 0.0
      %364 = vmatpush1.msra.mxu0 0.0
      %365 = vmatprep.subr.mxu0 0.0
      %366 = vmatpush1.msra.mxu0 0.0
      %367 = vmatprep.subr.mxu0 0.0
      %368 = vmatpush1.msra.mxu0 0.0
      %369 = vmatprep.subr.mxu0 0.0
      %370 = vmatpush1.msra.mxu0 0.0
      %371 = vmatprep.subr.mxu0 0.0
      %372 = vmatpush1.msra.mxu0 0.0
      %373 = vmatprep.subr.mxu0 0.0
      %374 = vmatpush1.msra.mxu0 0.0
      %375 = vmatprep.subr.mxu0 %v344
      %376 = vmatpush1.msra.mxu0 %v343
      %377 = vmatprep.subr.mxu0 0.0
      %378 = vmatpush2.msra.mxu0 0.0
      %379 = vmatprep.subr.mxu0 0.0
      %380 = vmatpush2.msra.mxu0 0.0
      %381 = vmatprep.subr.mxu0 0.0
      %382 = vmatpush2.msra.mxu0 0.0
      %383 = vmatprep.subr.mxu0 0.0
      %384 = vmatpush2.msra.mxu0 0.0
      %385 = vmatprep.subr.mxu0 0.0
      %386 = vmatpush2.msra.mxu0 0.0
      %387 = vmatprep.subr.mxu0 0.0
      %388 = vmatpush2.msra.mxu0 0.0
      %389 = vmatprep.subr.mxu0 0.0
      %390 = vmatpush2.msra.mxu0 0.0
      %391 = vmatprep.subr.mxu0 0.0
      %392 = vmatpush2.msra.mxu0 0.0
      %393 = vmatprep.subr.mxu0 0.0
      %394 = vmatpush2.msra.mxu0 0.0
      %395 = vmatprep.subr.mxu0 0.0
      %396 = vmatpush2.msra.mxu0 0.0
      %397 = vmatprep.subr.mxu0 0.0
      %398 = vmatpush2.msra.mxu0 0.0
      %399 = vmatprep.subr.mxu0 0.0
      %400 = vmatpush2.msra.mxu0 0.0
      %401 = vmatprep.subr.mxu0 0.0
      %402 = vmatpush2.msra.mxu0 0.0
      %403 = vmatprep.subr.mxu0 0.0
      %404 = vmatpush2.msra.mxu0 0.0
      %405 = vmatprep.subr.mxu0 0.0
      %406 = vmatpush2.msra.mxu0 0.0
      %407 = vmatprep.subr.mxu0 0.0
      %408 = vmatpush2.msra.mxu0 0.0
      %409 = vmatprep.mubr.f32.mxu0 0.0
      %410 = vmatmul.mubr.f32.gmra.mxu0 %v108
      %v411 = vpop.f32.mrf.mxu0
      %v412 = vadd.f32 0.0, %v411
      %v413 = vpop.f32.mrf.mxu0
      %v414 = vadd.f32 0.0, %v413
      %415 = vdwg.mxu0
      %v416 = vsel %vm181, %v412, 0.0
      %v417 = vsel %vm181, %v414, 0.0
      %v418 = vadd.f32 %v416, %v417
      %419 = vadd.xlane.f32.xlu0 %v418
      %v420 = vpop.xlane.xlu0 %419
      %v421 = vld [vmem:[#allocation6] sm:$0xff]
      %v422 = vld [vmem:[#allocation6 + $0x8] sm:$0xff]
      %423 = vmatprep.subr.mxu0 0.0
      %424 = vmatpush1.msra.mxu0 0.0
      %425 = vmatprep.subr.mxu0 0.0
      %426 = vmatpush1.msra.mxu0 0.0
      %427 = vmatprep.subr.mxu0 0.0
      %428 = vmatpush1.msra.mxu0 0.0
      %429 = vmatprep.subr.mxu0 0.0
      %430 = vmatpush1.msra.mxu0 0.0
      %431 = vmatprep.subr.mxu0 0.0
      %432 = vmatpush1.msra.mxu0 0.0
      %433 = vmatprep.subr.mxu0 0.0
      %434 = vmatpush1.msra.mxu0 0.0
      %435 = vmatprep.subr.mxu0 0.0
      %436 = vmatpush1.msra.mxu0 0.0
      %437 = vmatprep.subr.mxu0 0.0
      %438 = vmatpush1.msra.mxu0 0.0
      %439 = vmatprep.subr.mxu0 0.0
      %440 = vmatpush1.msra.mxu0 0.0
      %441 = vmatprep.subr.mxu0 0.0
      %442 = vmatpush1.msra.mxu0 0.0
      %443 = vmatprep.subr.mxu0 0.0
      %444 = vmatpush1.msra.mxu0 0.0
      %445 = vmatprep.subr.mxu0 0.0
      %446 = vmatpush1.msra.mxu0 0.0
      %447 = vmatprep.subr.mxu0 0.0
      %448 = vmatpush1.msra.mxu0 0.0
      %449 = vmatprep.subr.mxu0 0.0
      %450 = vmatpush1.msra.mxu0 0.0
      %451 = vmatprep.subr.mxu0 0.0
      %452 = vmatpush1.msra.mxu0 0.0
      %453 = vmatprep.subr.mxu0 %v422
      %454 = vmatpush1.msra.mxu0 %v421
      %455 = vmatprep.subr.mxu0 0.0
      %456 = vmatpush2.msra.mxu0 0.0
      %457 = vmatprep.subr.mxu0 0.0
      %458 = vmatpush2.msra.mxu0 0.0
      %459 = vmatprep.subr.mxu0 0.0
      %460 = vmatpush2.msra.mxu0 0.0
      %461 = vmatprep.subr.mxu0 0.0
      %462 = vmatpush2.msra.mxu0 0.0
      %463 = vmatprep.subr.mxu0 0.0
      %464 = vmatpush2.msra.mxu0 0.0
      %465 = vmatprep.subr.mxu0 0.0
      %466 = vmatpush2.msra.mxu0 0.0
      %467 = vmatprep.subr.mxu0 0.0
      %468 = vmatpush2.msra.mxu0 0.0
      %469 = vmatprep.subr.mxu0 0.0
      %470 = vmatpush2.msra.mxu0 0.0
      %471 = vmatprep.subr.mxu0 0.0
      %472 = vmatpush2.msra.mxu0 0.0
      %473 = vmatprep.subr.mxu0 0.0
      %474 = vmatpush2.msra.mxu0 0.0
      %475 = vmatprep.subr.mxu0 0.0
      %476 = vmatpush2.msra.mxu0 0.0
      %477 = vmatprep.subr.mxu0 0.0
      %478 = vmatpush2.msra.mxu0 0.0
      %479 = vmatprep.subr.mxu0 0.0
      %480 = vmatpush2.msra.mxu0 0.0
      %481 = vmatprep.subr.mxu0 0.0
      %482 = vmatpush2.msra.mxu0 0.0
      %483 = vmatprep.subr.mxu0 0.0
      %484 = vmatpush2.msra.mxu0 0.0
      %485 = vmatprep.subr.mxu0 0.0
      %486 = vmatpush2.msra.mxu0 0.0
      %487 = vmatprep.mubr.f32.mxu0 0.0
      %488 = vmatmul.mubr.f32.gmra.mxu0 %v108
      %v489 = vpop.f32.mrf.mxu0
      %v490 = vadd.f32 0.0, %v489
      %v491 = vpop.f32.mrf.mxu0
      %v492 = vadd.f32 0.0, %v491
      %493 = vdwg.mxu0
      %v494 = vsel %vm181, %v490, 0.0
      %v495 = vsel %vm181, %v492, 0.0
      %v496 = vadd.f32 %v494, %v495
      %497 = vadd.xlane.f32.xlu0 %v496
      %v498 = vpop.xlane.xlu0 %497
      %v499 = vmul.f32 %v186, %v264
      %v500 = vmul.f32 %v499, 0.0009765625
      %v501 = vsub.f32 %v342, %v500
      %v502 = vmul.f32 %v186, %v186
      %v503 = vmul.f32 %v502, 0.0009765625
      %v504 = vsub.f32 %v420, %v503
      %v505 = vmul.f32 %v264, %v264
      %v506 = vmul.f32 %v505, 0.0009765625
      %v507 = vsub.f32 %v498, %v506
      %v508 = vmul.f32 %v504, %v507
      %v509 = vadd.f32 %v508, 1e-08
      %v510 = vrsqrt.pop %v509
      %v511 = vmul.f32 %v501, %v510
      %vm512 = vcmask 1024
      %v513 = vsel %vm512, %v511, 0.0
      %514 = vadd.xlane.f32.xlu0 %v513
      %v515 = vpop.xlane.xlu0 %514
      %v516 = vrot.slane %v515, 4
      %v517 = vadd.f32 %v515, %v516
      %v518 = vrot.slane %v517, 2
      %v519 = vadd.f32 %v517, %v518
      %v520 = vrot.slane %v519, 1
      %v521 = vadd.f32 %v519, %v520
      %s522 = vtos %v521
      %v523 = vrcp.pop 2.0
      %s524 = vtos %v523
      %s525 = smul.f32 %s522, %s524
      %s526 = ssub.f32 1.0, %s525
      %v527 = vadd.f32 %v420, %v498
      %v528 = vmul.f32 %v342, 2.0
      %v529 = vsub.f32 %v527, %v528
      %v530 = vsel %vm512, %v529, 0.0
      %531 = vadd.xlane.f32.xlu0 %v530
      %v532 = vpop.xlane.xlu0 %531
      %v533 = vrot.slane %v532, 4
      %v534 = vadd.f32 %v532, %v533
      %v535 = vrot.slane %v534, 2
      %v536 = vadd.f32 %v534, %v535
      %v537 = vrot.slane %v536, 1
      %v538 = vadd.f32 %v536, %v537
      %s539 = vtos %v538
      %v540 = vrcp.pop 2048.0
      %s541 = vtos %v540
      %s542 = smul.f32 %s539, %s541
      %s543 = smul.f32 %s526, 0.5
      %s544 = sadd.f32 %s542, %s543
      %s545 = scalar_lea.smem [#allocation12], 0
      %546 = sst [smem:[%s545]] %s544
    $region25: #{tpu_custom_call.1} parent=1 // pred_fallthru
      _
    // Predicated region
    $region26: #{tpu_custom_call.1} parent=1 // pred_check
      _
    $region27: #{tpu_custom_call.1} parent=1 // pred_check_branch
      %548 = sbr.rel (0) target = $region29
    $region28: #{tpu_custom_call.1} parent=1 // pred_region
      %s550 = ssub.s32 16, 16
      %551 = vsyncadd [#allocation9], %s550
      %554 = dma.smem_to_hbm [#allocation12], 16, %s2, [#allocation9]
    $region29: #{tpu_custom_call.1} parent=1 // pred_fallthru
      _
    // Predicated region
    $region30: #{tpu_custom_call.1} parent=1 // pred_check
      _
    $region31: #{tpu_custom_call.1} parent=1 // pred_check_branch
      %556 = sbr.rel (0) target = $region33
    $region32: #{tpu_custom_call.1} parent=1 // pred_region
      %557 = dma.done [#allocation9], 16
    $region33: #{tpu_custom_call.1} parent=1 // pred_fallthru
      _
    %558 = sfence
    %559 = vsyncpa [#allocation8], 1
    %560 = vsyncpa [#allocation11], 1
    %561 = vsyncpa [#allocation9], 1

</llo_original>
